<compile_context>
chip_gen: v7x
topology: tpu7x:2x2x1
jax: 0.10.0
libtpu: 0.0.40
codegen_flags: <defaults>
</compile_context>

<pallas_src>
import jax
import jax.numpy as jnp
from jax import lax
from jax.experimental import pallas as pl
from jax.experimental.pallas import tpu as pltpu


# ----------------------------- helpers --------------------------------------

def _ru(x, m):
    return ((x + m - 1) // m) * m


def _pad2d(a, shape):
    return jnp.pad(a, ((0, shape[0] - a.shape[0]), (0, shape[1] - a.shape[1])))


def _l2_normalize_rows(x, eps=1e-12):
    # F.normalize(x, p=2, dim=1): x / max(||x||_2, eps).  rsqrt goes to the EUP slot.
    sumsq = jnp.sum(x * x, axis=1, keepdims=True)
    return x * lax.rsqrt(jnp.maximum(sumsq, eps * eps))


# Conservative single-block cap: total VMEM residency (inputs + output + f32
# intermediates) must fit every generation's default scoped VMEM with headroom.
_SINGLE_BLOCK_RESIDENCY_CAP = 10 * 2**20


# ----------------------------- Pallas kernel --------------------------------

def gcn_forward_kernel(x_ref, a_ref, w01_ref, w2_ref, bias_ref, emb_ref):
    f32 = jnp.float32
    bf16 = jnp.bfloat16
    hp = emb_ref.shape[-1]          # padded hidden width (multiple of 128)

    x = x_ref[...]                  # [Np, Cp]   bf16
    a_hat = a_ref[...]              # [Np, Np]   bf16 (normalized dense adjacency)
    biases = bias_ref[...]          # [8,  Hp]   f32: row0=b0, row1=b1(folded), row2=b2(folded)
    b0 = biases[0:1, :]
    b1 = biases[1:2, :]
    b2 = biases[2:3, :]

    # Fused lin0 + conv1 feature transform: x @ [W0 | W1*bn1_scale]  (one MXU pass)
    xw01 = jnp.dot(x, w01_ref[...], preferred_element_type=f32)    # [Np, 2*Hp] f32
    x0 = xw01[:, :hp] + b0                                          # lin0(x)
    xw1 = xw01[:, hp:]                                              # x @ W1 (BN folded)

    # conv1 aggregation + folded BN + ReLU + (eval) dropout + L2 norm + skip
    x1 = jnp.dot(a_hat, xw1.astype(bf16), preferred_element_type=f32) + b1
    x1 = jnp.maximum(x1, 0.0)
    x1 = _l2_normalize_rows(x1)
    x1 = x1 + 0.2 * x0

    # conv2 (BN folded into W2/b2) + (eval) dropout + L2 norm
    xw2 = jnp.dot(x1.astype(bf16), w2_ref[...], preferred_element_type=f32)
    x2 = jnp.dot(a_hat, xw2.astype(bf16), preferred_element_type=f32) + b2
    x2 = _l2_normalize_rows(x2)

    emb_ref[...] = x2 + 0.5 * x1    # [Np, Hp] lane-dense store
    # (classifier logits are computed from emb in the wrapper: tiny [N,H]@[H,2] in XLA)


# ------------------------------- wrapper -------------------------------------

def prepare_gcn_params(params, in_channels, hidden_channels):
    """One-time weight prep: fold eval-mode BN, pad lane-dense, cast to bf16, fuse W0|W1."""
    cp = _ru(in_channels, 128)
    hp = _ru(hidden_channels, 128)
    bf16 = jnp.bfloat16

    # Fold eval-mode BatchNorm into the conv weights/biases (exact: per-output-channel
    # scale commutes with the A_hat aggregation).
    w1f = params["w1"] * params["bn1_scale"]
    b1f = params["b1"] * params["bn1_scale"] + params["bn1_shift"]
    w2f = params["w2"] * params["bn2_scale"]
    b2f = params["b2"] * params["bn2_scale"] + params["bn2_shift"]

    # Fused, padded weight [Cp, 2*Hp]: first Hp cols = W0, last Hp cols = folded W1.
    w01 = jnp.concatenate(
        [_pad2d(params["w0"], (cp, hp)), _pad2d(w1f, (cp, hp))], axis=1).astype(bf16)
    w2p = _pad2d(w2f, (hp, hp)).astype(bf16)

    # Coalesced bias block [8, Hp] (sublane-aligned); rows 0..2 used.
    biases = jnp.zeros((8, hp), jnp.float32)
    biases = biases.at[0, :hidden_channels].set(params["b0"][0])
    biases = biases.at[1, :hidden_channels].set(b1f[0])
    biases = biases.at[2, :hidden_channels].set(b2f[0])

    return {"w01": w01, "w2": w2p, "biases": biases,
            "wc": params["wc"], "bc": params["bc"], "cp": cp, "hp": hp}


def gcn_forward(x, a_hat, prepped, hidden_channels, num_classes=2):
    """Fused forward pass for small graphs (everything VMEM-resident, one grid step)."""
    n, _ = x.shape
    np_ = _ru(n, 16)                  # bf16 sublane tile: 16 rows per packed vreg
    cp = prepped["cp"]
    hp = prepped["hp"]
    bf16 = jnp.bfloat16

    x_p = _pad2d(x, (np_, cp)).astype(bf16)
    a_p = _pad2d(a_hat, (np_, np_)).astype(bf16)

    # VMEM residency estimate: bf16 inputs + f32 bias block + f32 output + f32 temps.
    in_bytes = (x_p.size + a_p.size + prepped["w01"].size + prepped["w2"].size) * 2 \
        + prepped["biases"].size * 4
    out_bytes = np_ * hp * 4
    interm_bytes = np_ * (2 * hp) * 4 + 6 * np_ * hp * 4   # xw01 + {x0,x1,xw2,x2,emb,...}
    residency = in_bytes + out_bytes + interm_bytes
    assert residency <= _SINGLE_BLOCK_RESIDENCY_CAP, \
        "graph too large for the single-block VMEM kernel; needs the tiled/sparse path"

    vmem_limit = int(min(max(4 * residency, 16 * 2**20), 48 * 2**20))

    flops = 2 * np_ * cp * (2 * hp) + 2 * (2 * np_ * np_ * hp) + 2 * np_ * hp * hp
    cost = pl.CostEstimate(flops=flops, transcendentals=2 * np_,
                           bytes_accessed=in_bytes + out_bytes)

    vmem = pl.BlockSpec(memory_space=pltpu.MemorySpace.VMEM)
    emb_p = pl.pallas_call(
        gcn_forward_kernel,
        out_shape=jax.ShapeDtypeStruct((np_, hp), jnp.float32),
        in_specs=[vmem] * 5,
        out_specs=vmem,
        compiler_params=pltpu.CompilerParams(vmem_limit_bytes=vmem_limit),
        cost_estimate=cost,
    )(x_p, a_p, prepped["w01"], prepped["w2"], prepped["biases"])

    emb = emb_p[:n, :hidden_channels]
    # Classifier: only `num_classes`=2 useful columns — keep it in plain XLA f32.
    logits = emb @ prepped["wc"][:, :num_classes] + prepped["bc"][:, :num_classes]
    return emb, logits


# ------------------------------- JAX glue -----------------------------------

def build_gcn_adjacency(edge_index, edge_weight, num_nodes):
    """Densify COO graph into A_hat = D^-1/2 (A + I) D^-1/2 (PyG gcn_norm semantics)."""
    src = edge_index[0]
    dst = edge_index[1]
    if edge_weight is None:
        edge_weight = jnp.ones(src.shape[0], jnp.float32)
    loop = jnp.arange(num_nodes, dtype=src.dtype)
    src = jnp.concatenate([src, loop])
    dst = jnp.concatenate([dst, loop])
    w = jnp.concatenate([edge_weight.astype(jnp.float32),
                         jnp.ones(num_nodes, jnp.float32)])
    deg = jnp.zeros(num_nodes, jnp.float32).at[dst].add(w)
    dinv_sqrt = jnp.where(deg > 0, 1.0 / jnp.sqrt(deg), 0.0)
    norm = dinv_sqrt[src] * w * dinv_sqrt[dst]
    a_hat = jnp.zeros((num_nodes, num_nodes), jnp.float32).at[dst, src].add(norm)
    return a_hat


def init_params(key, in_channels, hidden_channels):
    ks = jax.random.split(key, 8)

    def uniform(k, shape, fan_in):
        bound = 1.0 / jnp.sqrt(jnp.float32(fan_in))
        return jax.random.uniform(k, shape, jnp.float32, -bound, bound)

    eps = 1e-5
    # Eval-mode BatchNorm1d with default params: gamma=1, beta=0, mean=0, var=1.
    bn_scale = jnp.full((1, hidden_channels), 1.0 / jnp.sqrt(1.0 + eps), jnp.float32)
    bn_shift = jnp.zeros((1, hidden_channels), jnp.float32)
    return {
        "w0": uniform(ks[0], (in_channels, hidden_channels), in_channels),
        "b0": uniform(ks[1], (1, hidden_channels), in_channels),
        "w1": uniform(ks[2], (in_channels, hidden_channels), in_channels),
        "b1": jnp.zeros((1, hidden_channels), jnp.float32),
        "w2": uniform(ks[3], (hidden_channels, hidden_channels), hidden_channels),
        "b2": jnp.zeros((1, hidden_channels), jnp.float32),
        "wc": uniform(ks[4], (hidden_channels, 2), hidden_channels),
        "bc": uniform(ks[5], (1, 2), hidden_channels),
        "bn1_scale": bn_scale, "bn1_shift": bn_shift,
        "bn2_scale": bn_scale, "bn2_shift": bn_shift,
    }


def gcn_forward_ref_matched(x, a_hat, p):
    """Pure-JAX reference mirroring the kernel's numerics (bf16 MXU operands, f32 acc,
    f32 classifier outside)."""
    bf16 = jnp.bfloat16
    f32 = jnp.float32
    xb, ab = x.astype(bf16), a_hat.astype(bf16)
    w1f = p["w1"] * p["bn1_scale"]
    b1f = p["b1"] * p["bn1_scale"] + p["bn1_shift"]
    w2f = p["w2"] * p["bn2_scale"]
    b2f = p["b2"] * p["bn2_scale"] + p["bn2_shift"]
    x0 = jnp.dot(xb, p["w0"].astype(bf16), preferred_element_type=f32) + p["b0"]
    xw1 = jnp.dot(xb, w1f.astype(bf16), preferred_element_type=f32)
    x1 = jnp.dot(ab, xw1.astype(bf16), preferred_element_type=f32) + b1f
    x1 = jnp.maximum(x1, 0.0)
    x1 = _l2_normalize_rows(x1)
    x1 = x1 + 0.2 * x0
    xw2 = jnp.dot(x1.astype(bf16), w2f.astype(bf16), preferred_element_type=f32)
    x2 = jnp.dot(ab, xw2.astype(bf16), preferred_element_type=f32) + b2f
    x2 = _l2_normalize_rows(x2)
    emb = x2 + 0.5 * x1
    logits = emb @ p["wc"] + p["bc"]
    return emb, logits


def gcn_forward_ref_f32(x, a_hat, p):
    """Full-f32 reference of the original module semantics (eval mode)."""
    x0 = x @ p["w0"] + p["b0"]
    x1 = a_hat @ (x @ p["w1"]) + p["b1"]
    x1 = x1 * p["bn1_scale"] + p["bn1_shift"]
    x1 = jnp.maximum(x1, 0.0)
    x1 = _l2_normalize_rows(x1)
    x1 = x1 + 0.2 * x0
    x2 = a_hat @ (x1 @ p["w2"]) + p["b2"]
    x2 = x2 * p["bn2_scale"] + p["bn2_shift"]
    x2 = _l2_normalize_rows(x2)
    emb = x2 + 0.5 * x1
    logits = emb @ p["wc"] + p["bc"]
    return emb, logits


# --------------------------------- main --------------------------------------

if __name__ == "__main__":
    num_nodes, in_channels, hidden_channels = 16, 8, 32

    key = jax.random.PRNGKey(0)
    kx, kw, kp = jax.random.split(key, 3)

    # Node features [num_nodes, in_channels]
    x = jax.random.normal(kx, (num_nodes, in_channels), jnp.float32)

    # Deterministic small graph: bidirectional ring + skip edges (i -> i+3)
    fwd = jnp.stack([jnp.arange(num_nodes), (jnp.arange(num_nodes) + 1) % num_nodes])
    bwd = jnp.stack([(jnp.arange(num_nodes) + 1) % num_nodes, jnp.arange(num_nodes)])
    skip = jnp.stack([jnp.arange(num_nodes), (jnp.arange(num_nodes) + 3) % num_nodes])
    edge_index = jnp.concatenate([fwd, bwd, skip], axis=1).astype(jnp.int32)  # [2, 48]
    edge_weight = jax.random.uniform(kw, (edge_index.shape[1],), jnp.float32, 0.5, 1.5)

    params = init_params(kp, in_channels, hidden_channels)
    a_hat = build_gcn_adjacency(edge_index, edge_weight, num_nodes)

    # One-time weight prep (BN fold + pad + bf16 cast) outside the per-call path.
    prepped = prepare_gcn_params(params, in_channels, hidden_channels)

    emb, logits = gcn_forward(x, a_hat, prepped, hidden_channels)
    emb, logits = jax.block_until_ready((emb, logits))

    assert emb.shape == (num_nodes, hidden_channels)
    assert logits.shape == (num_nodes, 2)

    # Tight check against a reference with matching (bf16-operand) numerics.
    emb_m, logits_m = gcn_forward_ref_matched(x, a_hat, params)
    assert jnp.allclose(emb, emb_m, rtol=1e-3, atol=1e-3)
    assert jnp.allclose(logits, logits_m, rtol=1e-3, atol=1e-3)

    # Loose sanity check against full-f32 module semantics (bf16 quantization error only).
    emb_f, logits_f = gcn_forward_ref_f32(x, a_hat, params)
    assert jnp.allclose(emb, emb_f, rtol=5e-2, atol=5e-2)
    assert jnp.allclose(logits, logits_f, rtol=5e-2, atol=5e-2)

    print("KERNEL_OK")
</pallas_src>

<mosaic_0001>
module attributes {stable_mosaic.version = 11 : i64} {
  func.func @gcn_forward_kernel(%arg0: memref<16x128xbf16, #tpu.memory_space<vmem>>, %arg1: memref<16x16xbf16, #tpu.memory_space<vmem>>, %arg2: memref<128x256xbf16, #tpu.memory_space<vmem>>, %arg3: memref<128x128xbf16, #tpu.memory_space<vmem>>, %arg4: memref<8x128xf32, #tpu.memory_space<vmem>>, %arg5: memref<16x128xf32, #tpu.memory_space<vmem>>) attributes {dimension_semantics = [], scalar_prefetch = 0 : i64, scratch_operands = 0 : i64, tpu.core_type = #tpu.core_type<tc>} {
    %c0 = arith.constant 0 : index
    %c0_0 = arith.constant 0 : index
    %0 = vector.load %arg0[%c0, %c0_0] : memref<16x128xbf16, #tpu.memory_space<vmem>>, vector<16x128xbf16>
    %c0_1 = arith.constant 0 : index
    %c0_2 = arith.constant 0 : index
    %1 = vector.load %arg1[%c0_1, %c0_2] : memref<16x16xbf16, #tpu.memory_space<vmem>>, vector<16x16xbf16>
    %c0_3 = arith.constant 0 : index
    %c0_4 = arith.constant 0 : index
    %2 = vector.load %arg4[%c0_3, %c0_4] : memref<8x128xf32, #tpu.memory_space<vmem>>, vector<8x128xf32>
    %3 = vector.extract_strided_slice %2 {offsets = [0, 0], sizes = [1, 128], strides = [1, 1]} : vector<8x128xf32> to vector<1x128xf32>
    %4 = vector.extract_strided_slice %2 {offsets = [1, 0], sizes = [1, 128], strides = [1, 1]} : vector<8x128xf32> to vector<1x128xf32>
    %5 = vector.extract_strided_slice %2 {offsets = [2, 0], sizes = [1, 128], strides = [1, 1]} : vector<8x128xf32> to vector<1x128xf32>
    %c0_5 = arith.constant 0 : index
    %c0_6 = arith.constant 0 : index
    %6 = vector.load %arg2[%c0_5, %c0_6] : memref<128x256xbf16, #tpu.memory_space<vmem>>, vector<128x256xbf16>
    %cst = arith.constant dense<0.000000e+00> : vector<16x256xf32>
    %7 = tpu.matmul %0, %6, %cst {dimension_numbers = #tpu.dot_dimension_numbers<[1], [0], [0], [1], [0, 0, 1, 1], [], []>} : vector<16x128xbf16>, vector<128x256xbf16>, vector<16x256xf32> -> vector<16x256xf32>
    %8 = vector.extract_strided_slice %7 {offsets = [0, 0], sizes = [16, 128], strides = [1, 1]} : vector<16x256xf32> to vector<16x128xf32>
    %9 = vector.broadcast %3 : vector<1x128xf32> to vector<16x128xf32>
    %10 = arith.addf %8, %9 : vector<16x128xf32>
    %11 = vector.extract_strided_slice %7 {offsets = [0, 128], sizes = [16, 128], strides = [1, 1]} : vector<16x256xf32> to vector<16x128xf32>
    %12 = arith.truncf %11 : vector<16x128xf32> to vector<16x128xbf16>
    %cst_7 = arith.constant dense<0.000000e+00> : vector<16x128xf32>
    %13 = tpu.matmul %1, %12, %cst_7 {dimension_numbers = #tpu.dot_dimension_numbers<[1], [0], [0], [1], [0, 0, 1, 1], [], []>} : vector<16x16xbf16>, vector<16x128xbf16>, vector<16x128xf32> -> vector<16x128xf32>
    %14 = vector.broadcast %4 : vector<1x128xf32> to vector<16x128xf32>
    %15 = arith.addf %13, %14 : vector<16x128xf32>
    %cst_8 = arith.constant 0.000000e+00 : f32
    %16 = vector.broadcast %cst_8 : f32 to vector<16x128xf32>
    %17 = arith.maximumf %15, %16 : vector<16x128xf32>
    %18 = arith.mulf %17, %17 : vector<16x128xf32>
    %cst_9 = arith.constant dense<0.000000e+00> : vector<16xf32>
    %19 = vector.multi_reduction <add>, %18, %cst_9 [1] : vector<16x128xf32> to vector<16xf32>
    %20 = vector.shape_cast %19 : vector<16xf32> to vector<16x1xf32>
    %cst_10 = arith.constant 1.000000e-24 : f32
    %21 = vector.broadcast %cst_10 : f32 to vector<16x1xf32>
    %22 = arith.maximumf %20, %21 : vector<16x1xf32>
    %23 = math.rsqrt %22 : vector<16x1xf32>
    %24 = vector.broadcast %23 : vector<16x1xf32> to vector<16x128xf32>
    %25 = arith.mulf %17, %24 : vector<16x128xf32>
    %cst_11 = arith.constant 2.000000e-01 : f32
    %26 = vector.broadcast %cst_11 : f32 to vector<16x128xf32>
    %27 = arith.mulf %26, %10 : vector<16x128xf32>
    %28 = arith.addf %25, %27 : vector<16x128xf32>
    %29 = arith.truncf %28 : vector<16x128xf32> to vector<16x128xbf16>
    %c0_12 = arith.constant 0 : index
    %c0_13 = arith.constant 0 : index
    %30 = vector.load %arg3[%c0_12, %c0_13] : memref<128x128xbf16, #tpu.memory_space<vmem>>, vector<128x128xbf16>
    %cst_14 = arith.constant dense<0.000000e+00> : vector<16x128xf32>
    %31 = tpu.matmul %29, %30, %cst_14 {dimension_numbers = #tpu.dot_dimension_numbers<[1], [0], [0], [1], [0, 0, 1, 1], [], []>} : vector<16x128xbf16>, vector<128x128xbf16>, vector<16x128xf32> -> vector<16x128xf32>
    %32 = arith.truncf %31 : vector<16x128xf32> to vector<16x128xbf16>
    %cst_15 = arith.constant dense<0.000000e+00> : vector<16x128xf32>
    %33 = tpu.matmul %1, %32, %cst_15 {dimension_numbers = #tpu.dot_dimension_numbers<[1], [0], [0], [1], [0, 0, 1, 1], [], []>} : vector<16x16xbf16>, vector<16x128xbf16>, vector<16x128xf32> -> vector<16x128xf32>
    %34 = vector.broadcast %5 : vector<1x128xf32> to vector<16x128xf32>
    %35 = arith.addf %33, %34 : vector<16x128xf32>
    %36 = arith.mulf %35, %35 : vector<16x128xf32>
    %cst_16 = arith.constant dense<0.000000e+00> : vector<16xf32>
    %37 = vector.multi_reduction <add>, %36, %cst_16 [1] : vector<16x128xf32> to vector<16xf32>
    %38 = vector.shape_cast %37 : vector<16xf32> to vector<16x1xf32>
    %cst_17 = arith.constant 1.000000e-24 : f32
    %39 = vector.broadcast %cst_17 : f32 to vector<16x1xf32>
    %40 = arith.maximumf %38, %39 : vector<16x1xf32>
    %41 = math.rsqrt %40 : vector<16x1xf32>
    %42 = vector.broadcast %41 : vector<16x1xf32> to vector<16x128xf32>
    %43 = arith.mulf %35, %42 : vector<16x128xf32>
    %cst_18 = arith.constant 5.000000e-01 : f32
    %44 = vector.broadcast %cst_18 : f32 to vector<16x128xf32>
    %45 = arith.mulf %44, %28 : vector<16x128xf32>
    %46 = arith.addf %43, %45 : vector<16x128xf32>
    %c0_19 = arith.constant 0 : index
    %c0_20 = arith.constant 0 : index
    %47 = vector.load %arg5[%c0_19, %c0_20] : memref<16x128xf32, #tpu.memory_space<vmem>>, vector<16x128xf32>
    tpu.vector_store %arg5[%c0_19, %c0_20], %46 {strides = array<i32>} : memref<16x128xf32, #tpu.memory_space<vmem>>, vector<16x128xf32>,
    return
  }
}

</mosaic_0001>

<llo_original>
// kernel: tpu_custom_call.1
$region0: #{tpu_custom_call.1}
  #allocation0 [shape = 'u32[]', space=smem, size = 0x4, offset = 0x4, fixed_abs, tag = 'smem constant byte address 0x4 - core index']
  #allocation1 [shape = 'u32[144,128]{1,0:T(1,128)}', space=vmem, size = 0x12000, scoped, tag = 'internal scratch']
  %s0 = inlined_call_operand.hbm [shape: bf16[16,128], index: 0, kind: input, shape index: {}]
  %s1 = inlined_call_operand.hbm [shape: bf16[16,16], index: 1, kind: input, shape index: {}]
  %s2 = inlined_call_operand.hbm [shape: bf16[128,256], index: 2, kind: input, shape index: {}]
  %s3 = inlined_call_operand.hbm [shape: bf16[128,128], index: 3, kind: input, shape index: {}]
  %s4 = inlined_call_operand.vmem [shape: f32[8,128], index: 4, kind: input, shape index: {}]
  %s5 = inlined_call_operand.hbm [shape: f32[16,128], index: 5, kind: output, shape index: {}]
  %s6 = sld [smem:[#allocation0]]
  $region46: #{tpu_custom_call.1} parent=0
    _
  %s8 = ssub.s32 1, %s6
  %s9 = scalar_select 0, %s8, %s6
  $region1: #{tpu_custom_call.1} parent=0
    #allocation2 [shape = 'u8[4096]{0}', space=vmem, size = 0x1000, scoped, tag = 'input window, operand 0, single buffered']
    #allocation3 [shape = 's32[1]{0}', space=sflag, size = 0x4, scoped, tag = 'scoped memory for tpu_custom_call.1']
    #allocation4 [shape = 's32[1]{0}', space=sflag, size = 0x4, scoped, tag = 'scoped memory for tpu_custom_call.1']
    #allocation5 [shape = 'u8[4096]{0}', space=vmem, size = 0x1000, scoped, tag = 'input window, operand 1, single buffered']
    #allocation6 [shape = 's32[1]{0}', space=sflag, size = 0x4, scoped, tag = 'scoped memory for tpu_custom_call.1']
    #allocation7 [shape = 'u8[65536]{0}', space=vmem, size = 0x10000, scoped, tag = 'input window, operand 2, single buffered']
    #allocation8 [shape = 'u8[32768]{0}', space=vmem, size = 0x8000, scoped, tag = 'input window, operand 3, single buffered']
    #allocation9 [shape = 's32[1]{0}', space=sflag, size = 0x4, scoped, tag = 'scoped memory for tpu_custom_call.1']
    #allocation10 [shape = 'u8[8192]{0}', space=vmem, size = 0x2000, scoped, tag = 'output window, operand 0, single buffered']
    %10 = vsyncpa [#allocation3], 0
    %11 = vsyncpa [#allocation6], 0
    %12 = vsyncpa [#allocation9], 0
    %13 = vsyncpa [#allocation4], 0
    // Predicated region
    $region2: #{tpu_custom_call.1} parent=1 // pred_check
      _
    $region3: #{tpu_custom_call.1} parent=1 // pred_check_branch
      %15 = sbr.rel (0) target = $region5
    $region4: #{tpu_custom_call.1} parent=1 // pred_region
      %s17 = ssub.s32 128, 128
      %18 = vsyncadd [#allocation3], %s17
      %s19 = sshll.u32 [#allocation2], 4
      %s20 = int_to_ptr.vmem [resolvable:$true] %s19
      %25 = dma.hbm_to_vmem [thread:$0]  %s0, 128, %s20, [#allocation3], 64, 64, 4
    $region5: #{tpu_custom_call.1} parent=1 // pred_fallthru
      _
    // Predicated region
    $region6: #{tpu_custom_call.1} parent=1 // pred_check
      _
    $region7: #{tpu_custom_call.1} parent=1 // pred_check_branch
      %27 = sbr.rel (0) target = $region9
    $region8: #{tpu_custom_call.1} parent=1 // pred_region
      %s29 = ssub.s32 128, 128
      %30 = vsyncadd [#allocation6], %s29
      %s31 = sshll.u32 [#allocation5], 4
      %s32 = int_to_ptr.vmem [resolvable:$true] %s31
      %37 = dma.hbm_to_vmem [thread:$0]  %s1, 128, %s32, [#allocation6], 64, 64, 4
    $region9: #{tpu_custom_call.1} parent=1 // pred_fallthru
      _
    // Predicated region
    $region10: #{tpu_custom_call.1} parent=1 // pred_check
      _
    $region11: #{tpu_custom_call.1} parent=1 // pred_check_branch
      %39 = sbr.rel (0) target = $region13
    $region12: #{tpu_custom_call.1} parent=1 // pred_region
      %s41 = ssub.s32 2048, 2048
      %42 = vsyncadd [#allocation6], %s41
      %s43 = sshll.u32 [#allocation7], 4
      %s44 = int_to_ptr.vmem [resolvable:$true] %s43
      %49 = dma.hbm_to_vmem [thread:$0]  %s2, 2048, %s44, [#allocation6], 128, 128, 8
    $region13: #{tpu_custom_call.1} parent=1 // pred_fallthru
      _
    // Predicated region
    $region14: #{tpu_custom_call.1} parent=1 // pred_check
      _
    $region15: #{tpu_custom_call.1} parent=1 // pred_check_branch
      %51 = sbr.rel (0) target = $region17
    $region16: #{tpu_custom_call.1} parent=1 // pred_region
      %s53 = ssub.s32 1024, 1024
      %54 = vsyncadd [#allocation9], %s53
      %s55 = sshll.u32 [#allocation8], 4
      %s56 = int_to_ptr.vmem [resolvable:$true] %s55
      %61 = dma.hbm_to_vmem [thread:$0]  %s3, 1024, %s56, [#allocation9], 64, 64, 4
    $region17: #{tpu_custom_call.1} parent=1 // pred_fallthru
      _
    // Predicated region
    $region18: #{tpu_custom_call.1} parent=1 // pred_check
      _
    $region19: #{tpu_custom_call.1} parent=1 // pred_check_branch
      %63 = sbr.rel (0) target = $region21
    $region20: #{tpu_custom_call.1} parent=1 // pred_region
      _
    $region21: #{tpu_custom_call.1} parent=1 // pred_fallthru
      _
    // Predicated region
    $region22: #{tpu_custom_call.1} parent=1 // pred_check
      _
    $region23: #{tpu_custom_call.1} parent=1 // pred_check_branch
      %65 = sbr.rel (0) target = $region25
    $region24: #{tpu_custom_call.1} parent=1 // pred_region
      %66 = dma.done [#allocation3], 128
    $region25: #{tpu_custom_call.1} parent=1 // pred_fallthru
      _
    // Predicated region
    $region26: #{tpu_custom_call.1} parent=1 // pred_check
      _
    $region27: #{tpu_custom_call.1} parent=1 // pred_check_branch
      %68 = sbr.rel (0) target = $region29
    $region28: #{tpu_custom_call.1} parent=1 // pred_region
      %69 = dma.done [#allocation6], 128
    $region29: #{tpu_custom_call.1} parent=1 // pred_fallthru
      _
    // Predicated region
    $region30: #{tpu_custom_call.1} parent=1 // pred_check
      _
    $region31: #{tpu_custom_call.1} parent=1 // pred_check_branch
      %71 = sbr.rel (0) target = $region33
    $region32: #{tpu_custom_call.1} parent=1 // pred_region
      %72 = dma.done [#allocation6], 2048
    $region33: #{tpu_custom_call.1} parent=1 // pred_fallthru
      _
    // Predicated region
    $region34: #{tpu_custom_call.1} parent=1 // pred_check
      _
    $region35: #{tpu_custom_call.1} parent=1 // pred_check_branch
      %74 = sbr.rel (0) target = $region37
    $region36: #{tpu_custom_call.1} parent=1 // pred_region
      %75 = dma.done [#allocation9], 1024
    $region37: #{tpu_custom_call.1} parent=1 // pred_fallthru
      _
    %v77 = vld [vmem:[#allocation2] sm:$0xf]
    %v78 = vld [vmem:[#allocation2 + $0x4] sm:$0xf]
    %v79 = vld [vmem:[#allocation5] sm:$0xf]
    %v80 = vld [vmem:[#allocation5 + $0x4] sm:$0xf]
    %v81 = vld [vmem:[%s4] sm:$0xff]
    %v82 = vld [vmem:[#allocation7] sm:$0xff]
    %v83 = vld [vmem:[#allocation7 + $0x8] sm:$0xff]
    %v84 = vld [vmem:[#allocation7 + $0x10] sm:$0xff]
    %v85 = vld [vmem:[#allocation7 + $0x18] sm:$0xff]
    %v86 = vld [vmem:[#allocation7 + $0x20] sm:$0xff]
    %v87 = vld [vmem:[#allocation7 + $0x28] sm:$0xff]
    %v88 = vld [vmem:[#allocation7 + $0x30] sm:$0xff]
    %v89 = vld [vmem:[#allocation7 + $0x38] sm:$0xff]
    %v90 = vld [vmem:[#allocation7 + $0x40] sm:$0xff]
    %v91 = vld [vmem:[#allocation7 + $0x48] sm:$0xff]
    %v92 = vld [vmem:[#allocation7 + $0x50] sm:$0xff]
    %v93 = vld [vmem:[#allocation7 + $0x58] sm:$0xff]
    %v94 = vld [vmem:[#allocation7 + $0x60] sm:$0xff]
    %v95 = vld [vmem:[#allocation7 + $0x68] sm:$0xff]
    %v96 = vld [vmem:[#allocation7 + $0x70] sm:$0xff]
    %v97 = vld [vmem:[#allocation7 + $0x78] sm:$0xff]
    %v100 = vunpack.c.l.b16 %v77
    %v101 = vunpack.c.l.b16 %v78
    %v102 = vpack.c.b16 %v101, %v100
    %v120 = vunpack.c.l.b16 %v82
    %v121 = vunpack.c.h.b16 %v82
    %v122 = vunpack.c.l.b16 %v83
    %v123 = vunpack.c.h.b16 %v83
    %v124 = vunpack.c.l.b16 %v84
    %v125 = vunpack.c.h.b16 %v84
    %v126 = vunpack.c.l.b16 %v85
    %v127 = vunpack.c.h.b16 %v85
    %v128 = vunpack.c.l.b16 %v86
    %v129 = vunpack.c.h.b16 %v86
    %v130 = vunpack.c.l.b16 %v87
    %v131 = vunpack.c.h.b16 %v87
    %v132 = vunpack.c.l.b16 %v88
    %v133 = vunpack.c.h.b16 %v88
    %v134 = vunpack.c.l.b16 %v89
    %v135 = vunpack.c.h.b16 %v89
    %v136 = vunpack.c.l.b16 %v90
    %v137 = vunpack.c.h.b16 %v90
    %v138 = vunpack.c.l.b16 %v91
    %v139 = vunpack.c.h.b16 %v91
    %v140 = vunpack.c.l.b16 %v92
    %v141 = vunpack.c.h.b16 %v92
    %v142 = vunpack.c.l.b16 %v93
    %v143 = vunpack.c.h.b16 %v93
    %v144 = vunpack.c.l.b16 %v94
    %v145 = vunpack.c.h.b16 %v94
    %v146 = vunpack.c.l.b16 %v95
    %v147 = vunpack.c.h.b16 %v95
    %v148 = vunpack.c.l.b16 %v96
    %v149 = vunpack.c.h.b16 %v96
    %v150 = vunpack.c.l.b16 %v97
    %v151 = vunpack.c.h.b16 %v97
    %v152 = vpack.c.b16 %v122, %v120
    %v153 = vpack.c.b16 %v123, %v121
    %v154 = vpack.c.b16 %v126, %v124
    %v155 = vpack.c.b16 %v127, %v125
    %v156 = vpack.c.b16 %v130, %v128
    %v157 = vpack.c.b16 %v131, %v129
    %v158 = vpack.c.b16 %v134, %v132
    %v159 = vpack.c.b16 %v135, %v133
    %v160 = vpack.c.b16 %v138, %v136
    %v161 = vpack.c.b16 %v139, %v137
    %v162 = vpack.c.b16 %v142, %v140
    %v163 = vpack.c.b16 %v143, %v141
    %v164 = vpack.c.b16 %v146, %v144
    %v165 = vpack.c.b16 %v147, %v145
    %v166 = vpack.c.b16 %v150, %v148
    %v167 = vpack.c.b16 %v151, %v149
    %184 = vmatprep.subr.bf16.mxu0 %v153
    %185 = vmatpush1.bf16.msra.mxu0 %v152
    %186 = vmatprep.subr.bf16.mxu0 %v155
    %187 = vmatpush1.bf16.msra.mxu0 %v154
    %188 = vmatprep.subr.bf16.mxu0 %v157
    %189 = vmatpush1.bf16.msra.mxu0 %v156
    %190 = vmatprep.subr.bf16.mxu0 %v159
    %191 = vmatpush1.bf16.msra.mxu0 %v158
    %192 = vmatprep.subr.bf16.mxu0 %v161
    %193 = vmatpush1.bf16.msra.mxu0 %v160
    %194 = vmatprep.subr.bf16.mxu0 %v163
    %195 = vmatpush1.bf16.msra.mxu0 %v162
    %196 = vmatprep.subr.bf16.mxu0 %v165
    %197 = vmatpush1.bf16.msra.mxu0 %v164
    %198 = vmatprep.subr.bf16.mxu0 %v167
    %199 = vmatpush1.bf16.msra.mxu0 %v166
    %200 = vmatprep.subr.bf16.mxu0 0
    %201 = vmatpush1.bf16.msra.mxu0 0
    %202 = vmatprep.subr.bf16.mxu0 0
    %203 = vmatpush1.bf16.msra.mxu0 0
    %204 = vmatprep.subr.bf16.mxu0 0
    %205 = vmatpush1.bf16.msra.mxu0 0
    %206 = vmatprep.subr.bf16.mxu0 0
    %207 = vmatpush1.bf16.msra.mxu0 0
    %208 = vmatprep.subr.bf16.mxu0 0
    %209 = vmatpush1.bf16.msra.mxu0 0
    %210 = vmatprep.subr.bf16.mxu0 0
    %211 = vmatpush1.bf16.msra.mxu0 0
    %212 = vmatprep.subr.bf16.mxu0 0
    %213 = vmatpush1.bf16.msra.mxu0 0
    %214 = vmatprep.subr.bf16.mxu0 0
    %215 = vmatpush1.bf16.msra.mxu0 0
    %216 = vmatprep.mubr.bf16.mxu0 0
    %217 = vmatmul.mubr.bf16.gmra.mrb[0].mxu0 %v102
    %v218 = vpop.f32.mrb[0].mxu0
    %v219 = vadd.f32 0.0, %v218
    %v220 = vpop.f32.mrb[0].mxu0
    %v221 = vadd.f32 0.0, %v220
    %v222 = vpop.f32.mrb[0].mxu0
    %v223 = vadd.f32 0.0, %v222
    %v224 = vpop.f32.mrb[0].mxu0
    %v225 = vadd.f32 0.0, %v224
    %226 = vdwg.mxu0
    %v227 = vlaneseq
    %v228 = vshrl.u32 %v227, 7
    %v229 = vsub.s32 0, %v228
    %v230 = vrot.slane %v81, %v229
    %v231 = vadd.f32 %v219, %v230
    %v232 = vadd.f32 %v223, %v230
    %v233 = vpack.c.bf16 %v225, %v221
    %v234 = vlaneseq
    %v235 = vshrl.u32 %v234, 7
    %v236 = vsub.s32 1, %v235
    %v237 = vrot.slane %v81, %v236
    %v240 = vunpack.c.l.b16 %v79
    %v241 = vunpack.c.l.b16 %v80
    %v242 = vpack.c.b16 %v241, %v240
    %vm243 = vcmask 130048
    %v245 = vsel %vm243, %v242, 0
    %247 = vmatprep.subr.bf16.mxu0 0
    %248 = vmatpush1.bf16.msra.mxu0 %v233
    %249 = vmatprep.subr.bf16.mxu0 0
    %250 = vmatpush1.bf16.msra.mxu0 0
    %251 = vmatprep.subr.bf16.mxu0 0
    %252 = vmatpush1.bf16.msra.mxu0 0
    %253 = vmatprep.subr.bf16.mxu0 0
    %254 = vmatpush1.bf16.msra.mxu0 0
    %255 = vmatprep.subr.bf16.mxu0 0
    %256 = vmatpush1.bf16.msra.mxu0 0
    %257 = vmatprep.subr.bf16.mxu0 0
    %258 = vmatpush1.bf16.msra.mxu0 0
    %259 = vmatprep.subr.bf16.mxu0 0
    %260 = vmatpush1.bf16.msra.mxu0 0
    %261 = vmatprep.subr.bf16.mxu0 0
    %262 = vmatpush1.bf16.msra.mxu0 0
    %263 = vmatprep.subr.bf16.mxu0 0
    %264 = vmatpush1.bf16.msra.mxu0 0
    %265 = vmatprep.subr.bf16.mxu0 0
    %266 = vmatpush1.bf16.msra.mxu0 0
    %267 = vmatprep.subr.bf16.mxu0 0
    %268 = vmatpush1.bf16.msra.mxu0 0
    %269 = vmatprep.subr.bf16.mxu0 0
    %270 = vmatpush1.bf16.msra.mxu0 0
    %271 = vmatprep.subr.bf16.mxu0 0
    %272 = vmatpush1.bf16.msra.mxu0 0
    %273 = vmatprep.subr.bf16.mxu0 0
    %274 = vmatpush1.bf16.msra.mxu0 0
    %275 = vmatprep.subr.bf16.mxu0 0
    %276 = vmatpush1.bf16.msra.mxu0 0
    %277 = vmatprep.subr.bf16.mxu0 0
    %278 = vmatpush1.bf16.msra.mxu0 0
    %279 = vmatprep.mubr.bf16.mxu0 0
    %280 = vmatmul.mubr.bf16.gmra.mrb[0].mxu0 %v245
    %v281 = vpop.f32.mrb[0].mxu0
    %v282 = vadd.f32 %v237, %v281
    %v283 = vpop.f32.mrb[0].mxu0
    %v284 = vpop.f32.mrb[0].mxu0
    %v285 = vadd.f32 %v237, %v284
    %v286 = vpop.f32.mrb[0].mxu0
    %287 = vdwg.mxu0
    %v288 = vmax.f32 %v282, 0.0
    %v289 = vmax.f32 %v285, 0.0
    %v290 = vmul.f32 %v288, %v288
    %v291 = vmul.f32 %v289, %v289
    %292 = vadd.xlane.f32.xlu0 %v290
    %v293 = vpop.xlane.xlu0 %292
    %294 = vadd.xlane.f32.xlu0 %v291
    %v295 = vpop.xlane.xlu0 %294
    %v296 = vmax.f32 %v293, 1e-24
    %v297 = vmax.f32 %v295, 1e-24
    %v298 = vrsqrt.pop %v296
    %v299 = vrsqrt.pop %v297
    %v300 = vmul.f32 %v288, %v298
    %v301 = vmul.f32 %v289, %v299
    %v302 = vmul.f32 %v231, 0.2
    %v303 = vmul.f32 %v232, 0.2
    %v304 = vadd.f32 %v300, %v302
    %v305 = vadd.f32 %v301, %v303
    %v306 = vpack.c.bf16 %v305, %v304
    %v307 = vld [vmem:[#allocation8] sm:$0xf]
    %v308 = vld [vmem:[#allocation8 + $0x4] sm:$0xf]
    %v309 = vld [vmem:[#allocation8 + $0x8] sm:$0xf]
    %v310 = vld [vmem:[#allocation8 + $0xc] sm:$0xf]
    %v311 = vld [vmem:[#allocation8 + $0x10] sm:$0xf]
    %v312 = vld [vmem:[#allocation8 + $0x14] sm:$0xf]
    %v313 = vld [vmem:[#allocation8 + $0x18] sm:$0xf]
    %v314 = vld [vmem:[#allocation8 + $0x1c] sm:$0xf]
    %v315 = vld [vmem:[#allocation8 + $0x20] sm:$0xf]
    %v316 = vld [vmem:[#allocation8 + $0x24] sm:$0xf]
    %v317 = vld [vmem:[#allocation8 + $0x28] sm:$0xf]
    %v318 = vld [vmem:[#allocation8 + $0x2c] sm:$0xf]
    %v319 = vld [vmem:[#allocation8 + $0x30] sm:$0xf]
    %v320 = vld [vmem:[#allocation8 + $0x34] sm:$0xf]
    %v321 = vld [vmem:[#allocation8 + $0x38] sm:$0xf]
    %v322 = vld [vmem:[#allocation8 + $0x3c] sm:$0xf]
    %v339 = vunpack.c.l.b16 %v307
    %v340 = vunpack.c.l.b16 %v308
    %v341 = vunpack.c.l.b16 %v309
    %v342 = vunpack.c.l.b16 %v310
    %v343 = vunpack.c.l.b16 %v311
    %v344 = vunpack.c.l.b16 %v312
    %v345 = vunpack.c.l.b16 %v313
    %v346 = vunpack.c.l.b16 %v314
    %v347 = vunpack.c.l.b16 %v315
    %v348 = vunpack.c.l.b16 %v316
    %v349 = vunpack.c.l.b16 %v317
    %v350 = vunpack.c.l.b16 %v318
    %v351 = vunpack.c.l.b16 %v319
    %v352 = vunpack.c.l.b16 %v320
    %v353 = vunpack.c.l.b16 %v321
    %v354 = vunpack.c.l.b16 %v322
    %v355 = vpack.c.b16 %v340, %v339
    %v356 = vpack.c.b16 %v342, %v341
    %v357 = vpack.c.b16 %v344, %v343
    %v358 = vpack.c.b16 %v346, %v345
    %v359 = vpack.c.b16 %v348, %v347
    %v360 = vpack.c.b16 %v350, %v349
    %v361 = vpack.c.b16 %v352, %v351
    %v362 = vpack.c.b16 %v354, %v353
    %371 = vmatprep.subr.bf16.mxu0 0
    %372 = vmatpush1.bf16.msra.mxu0 %v355
    %373 = vmatprep.subr.bf16.mxu0 0
    %374 = vmatpush1.bf16.msra.mxu0 %v356
    %375 = vmatprep.subr.bf16.mxu0 0
    %376 = vmatpush1.bf16.msra.mxu0 %v357
    %377 = vmatprep.subr.bf16.mxu0 0
    %378 = vmatpush1.bf16.msra.mxu0 %v358
    %379 = vmatprep.subr.bf16.mxu0 0
    %380 = vmatpush1.bf16.msra.mxu0 %v359
    %381 = vmatprep.subr.bf16.mxu0 0
    %382 = vmatpush1.bf16.msra.mxu0 %v360
    %383 = vmatprep.subr.bf16.mxu0 0
    %384 = vmatpush1.bf16.msra.mxu0 %v361
    %385 = vmatprep.subr.bf16.mxu0 0
    %386 = vmatpush1.bf16.msra.mxu0 %v362
    %387 = vmatprep.subr.bf16.mxu0 0
    %388 = vmatpush1.bf16.msra.mxu0 0
    %389 = vmatprep.subr.bf16.mxu0 0
    %390 = vmatpush1.bf16.msra.mxu0 0
    %391 = vmatprep.subr.bf16.mxu0 0
    %392 = vmatpush1.bf16.msra.mxu0 0
    %393 = vmatprep.subr.bf16.mxu0 0
    %394 = vmatpush1.bf16.msra.mxu0 0
    %395 = vmatprep.subr.bf16.mxu0 0
    %396 = vmatpush1.bf16.msra.mxu0 0
    %397 = vmatprep.subr.bf16.mxu0 0
    %398 = vmatpush1.bf16.msra.mxu0 0
    %399 = vmatprep.subr.bf16.mxu0 0
    %400 = vmatpush1.bf16.msra.mxu0 0
    %401 = vmatprep.subr.bf16.mxu0 0
    %402 = vmatpush1.bf16.msra.mxu0 0
    %403 = vmatprep.mubr.bf16.mxu0 0
    %404 = vmatmul.mubr.bf16.gmra.mrb[0].mxu0 %v306
    %v405 = vpop.f32.mrb[0].mxu0
    %v406 = vadd.f32 0.0, %v405
    %v407 = vpop.f32.mrb[0].mxu0
    %v408 = vpop.f32.mrb[0].mxu0
    %v409 = vadd.f32 0.0, %v408
    %v410 = vpop.f32.mrb[0].mxu0
    %411 = vdwg.mxu0
    %v412 = vpack.c.bf16 %v409, %v406
    %v413 = vlaneseq
    %v414 = vshrl.u32 %v413, 7
    %v415 = vsub.s32 2, %v414
    %v416 = vrot.slane %v81, %v415
    %417 = vmatprep.subr.bf16.mxu0 0
    %418 = vmatpush1.bf16.msra.mxu0 %v412
    %419 = vmatprep.subr.bf16.mxu0 0
    %420 = vmatpush1.bf16.msra.mxu0 0
    %421 = vmatprep.subr.bf16.mxu0 0
    %422 = vmatpush1.bf16.msra.mxu0 0
    %423 = vmatprep.subr.bf16.mxu0 0
    %424 = vmatpush1.bf16.msra.mxu0 0
    %425 = vmatprep.subr.bf16.mxu0 0
    %426 = vmatpush1.bf16.msra.mxu0 0
    %427 = vmatprep.subr.bf16.mxu0 0
    %428 = vmatpush1.bf16.msra.mxu0 0
    %429 = vmatprep.subr.bf16.mxu0 0
    %430 = vmatpush1.bf16.msra.mxu0 0
    %431 = vmatprep.subr.bf16.mxu0 0
    %432 = vmatpush1.bf16.msra.mxu0 0
    %433 = vmatprep.subr.bf16.mxu0 0
    %434 = vmatpush1.bf16.msra.mxu0 0
    %435 = vmatprep.subr.bf16.mxu0 0
    %436 = vmatpush1.bf16.msra.mxu0 0
    %437 = vmatprep.subr.bf16.mxu0 0
    %438 = vmatpush1.bf16.msra.mxu0 0
    %439 = vmatprep.subr.bf16.mxu0 0
    %440 = vmatpush1.bf16.msra.mxu0 0
    %441 = vmatprep.subr.bf16.mxu0 0
    %442 = vmatpush1.bf16.msra.mxu0 0
    %443 = vmatprep.subr.bf16.mxu0 0
    %444 = vmatpush1.bf16.msra.mxu0 0
    %445 = vmatprep.subr.bf16.mxu0 0
    %446 = vmatpush1.bf16.msra.mxu0 0
    %447 = vmatprep.subr.bf16.mxu0 0
    %448 = vmatpush1.bf16.msra.mxu0 0
    %449 = vmatprep.mubr.bf16.mxu0 0
    %450 = vmatmul.mubr.bf16.gmra.mrb[0].mxu0 %v245
    %v451 = vpop.f32.mrb[0].mxu0
    %v452 = vadd.f32 %v416, %v451
    %v453 = vpop.f32.mrb[0].mxu0
    %v454 = vpop.f32.mrb[0].mxu0
    %v455 = vadd.f32 %v416, %v454
    %v456 = vpop.f32.mrb[0].mxu0
    %457 = vdwg.mxu0
    %v458 = vmul.f32 %v452, %v452
    %v459 = vmul.f32 %v455, %v455
    %460 = vadd.xlane.f32.xlu0 %v458
    %v461 = vpop.xlane.xlu0 %460
    %462 = vadd.xlane.f32.xlu0 %v459
    %v463 = vpop.xlane.xlu0 %462
    %v464 = vmax.f32 %v461, 1e-24
    %v465 = vmax.f32 %v463, 1e-24
    %v466 = vrsqrt.pop %v464
    %v467 = vrsqrt.pop %v465
    %v468 = vmul.f32 %v452, %v466
    %v469 = vmul.f32 %v455, %v467
    %v470 = vmul.f32 %v304, 0.5
    %v471 = vmul.f32 %v305, 0.5
    %v472 = vadd.f32 %v468, %v470
    %v473 = vadd.f32 %v469, %v471
    %474 = vst [vmem:[#allocation10] sm:$0xff] %v472
    %475 = vst [vmem:[#allocation10 + $0x8] sm:$0xff] %v473
    // Predicated region
    $region38: #{tpu_custom_call.1} parent=1 // pred_check
      _
    $region39: #{tpu_custom_call.1} parent=1 // pred_check_branch
      %477 = sbr.rel (0) target = $region41
    $region40: #{tpu_custom_call.1} parent=1 // pred_region
      %s479 = ssub.s32 256, 256
      %480 = vsyncadd [#allocation4], %s479
      %s481 = sshll.u32 [#allocation10], 4
      %s482 = int_to_ptr.vmem [resolvable:$true] %s481
      %487 = dma.vmem_to_hbm [thread:$0]  %s482, 256, %s5, [#allocation4], 128, 128, 8
    $region41: #{tpu_custom_call.1} parent=1 // pred_fallthru
      _
    // Predicated region
    $region42: #{tpu_custom_call.1} parent=1 // pred_check
      _
    $region43: #{tpu_custom_call.1} parent=1 // pred_check_branch
      %489 = sbr.rel (0) target = $region45
    $region44: #{tpu_custom_call.1} parent=1 // pred_region
      %490 = dma.done [#allocation4], 256
    $region45: #{tpu_custom_call.1} parent=1 // pred_fallthru
      _
    %491 = vsyncpa [#allocation3], 1
    %492 = vsyncpa [#allocation6], 1
    %493 = vsyncpa [#allocation9], 1
    %494 = vsyncpa [#allocation4], 1

</llo_original>
